<compile_context>
chip_gen: v5e
topology: v5e:2x2
jax: 0.10.0
libtpu: 0.0.40
codegen_flags: <defaults>
</compile_context>

<pallas_src>
import functools

import jax
import jax.numpy as jnp
from jax import lax
from jax.experimental import pallas as pl
from jax.experimental.pallas import tpu as pltpu


# ~2 MiB x-block per grid step: big enough to sit at the measured HBM-roofline
# saturation point, small enough that 4x (double-buffered in + out) plus the
# tiny weights stays well under the default scoped VMEM on all generations.
_BLOCK_BUDGET_BYTES = 2 << 20


# ---------------------------------------------------------------------------
# Kernels
# ---------------------------------------------------------------------------
def _cse_fused_kernel(x_ref, w1_ref, b1_ref, w2_ref, b2_ref, o_ref, *, inv_hw):
    # x_ref: (Nb, C, HWp) -- lane-dense (padded HW on the lane axis).
    x = x_ref[...]

    # Global average pool over the lane axis, accumulated in f32 -> (Nb, C).
    pooled = jnp.sum(x, axis=-1, dtype=jnp.float32) * inv_hw

    w1 = w1_ref[...].astype(jnp.float32)
    b1 = b1_ref[...].astype(jnp.float32)
    w2 = w2_ref[...].astype(jnp.float32)
    b2 = b2_ref[...].astype(jnp.float32)

    # Squeeze: (Nb, C) x (Cr, C), contracting on C -> (Nb, Cr); + bias; ReLU.
    h = lax.dot_general(
        pooled, w1, (((1,), (1,)), ((), ())),
        preferred_element_type=jnp.float32) + b1
    h = jnp.maximum(h, 0.0)

    # Excite: (Nb, Cr) x (C, Cr), contracting on Cr -> (Nb, C); + bias; sigmoid.
    g = lax.dot_general(
        h, w2, (((1,), (1,)), ((), ())),
        preferred_element_type=jnp.float32) + b2
    g = jax.nn.sigmoid(g)

    # Per-(example, channel) rescale; lane-broadcast of g is cheap.
    o_ref[...] = (x * g[:, :, None]).astype(o_ref.dtype)


def _rescale_kernel(x_ref, g_ref, o_ref):
    # x_ref: (1, C, HWb) lane-dense chunk; g_ref: (1, C, 1) f32 gates.
    o_ref[...] = (x_ref[...] * g_ref[...]).astype(o_ref.dtype)


# ---------------------------------------------------------------------------
# Sizing helpers
# ---------------------------------------------------------------------------
def _num_tensorcores():
    """Best-effort TensorCore count per chip (2 on v7x, 1 on v5e/v6e)."""
    try:
        info = pltpu.get_tpu_info()
        for attr in ("num_cores", "num_tensorcores", "tensorcore_count",
                     "cores_per_chip"):
            v = getattr(info, attr, None)
            if v:
                return int(v)
        # v7x exposes 64 MiB VMEM per TC (2 TCs/chip); v5e/v6e expose 128 MiB.
        vmem = int(getattr(info, "vmem_capacity_bytes", 64 << 20))
        return 2 if vmem <= (64 << 20) else 1
    except Exception:
        return 2  # conservative: keep the batch axis splittable


def _pick_batch_block(n, per_example_bytes, budget_bytes, cores):
    """Largest divisor of n whose block fits the budget; on 2-TC chips keep
    at least 2 grid steps so the parallel batch axis can be split."""
    max_nb = max(1, int(budget_bytes // max(per_example_bytes, 1)))
    if cores >= 2 and n >= 2:
        max_nb = min(max_nb, n // 2)
    max_nb = max(1, max_nb)
    nb = 1
    for d in range(1, n + 1):
        if n % d == 0 and d <= max_nb:
            nb = d
    return nb


def _pick_hw_block(hwp, c, itemsize, budget_bytes):
    """Largest multiple-of-128 divisor of hwp such that (C, HWb) fits budget."""
    m = hwp // 128
    best = 1
    for d in range(1, m + 1):
        if m % d == 0 and 128 * d * c * itemsize <= budget_bytes:
            best = d
    return 128 * best


# ---------------------------------------------------------------------------
# Wrapper
# ---------------------------------------------------------------------------
def _cse_layer_impl(x, w1, b1, w2, b2):
    """x: (N, C, H, W); w1: (Cr, C); b1: (Cr,); w2: (C, Cr); b2: (C,).
    Returns x * sigmoid(conv2(relu(conv1(gap(x))))) with the same shape/dtype."""
    N, C, H, W = x.shape
    Cr = w1.shape[0]
    HW = H * W
    itemsize = jnp.dtype(x.dtype).itemsize

    # Lane-dense layout; pad HW up to a multiple of 128 for unmasked stores.
    HWp = ((HW + 127) // 128) * 128
    x2 = x.reshape(N, C, HW)
    if HWp != HW:
        x2 = jnp.pad(x2, ((0, 0), (0, 0), (0, HWp - HW)))

    per_example = C * HWp * itemsize
    cores = _num_tensorcores()
    use_fused = (per_example <= _BLOCK_BUDGET_BYTES) and (N >= 4)

    w_bytes = (w1.size + b1.size + w2.size + b2.size) * itemsize

    if use_fused:
        # -- single-pass: pool + gates + rescale inside the kernel -----------
        Nb = _pick_batch_block(N, per_example, _BLOCK_BUDGET_BYTES, cores)
        grid = (N // Nb,)

        cost = pl.CostEstimate(
            flops=int(N * (2 * C * HWp + 4 * C * Cr)),
            transcendentals=int(N * C),
            bytes_accessed=int(2 * N * C * HWp * itemsize + w_bytes),
        )

        out2 = pl.pallas_call(
            functools.partial(_cse_fused_kernel, inv_hw=1.0 / HW),
            out_shape=jax.ShapeDtypeStruct((N, C, HWp), x.dtype),
            grid_spec=pltpu.PrefetchScalarGridSpec(
                num_scalar_prefetch=0,
                grid=grid,
                in_specs=[
                    pl.BlockSpec((Nb, C, HWp), lambda i: (i, 0, 0)),
                    pl.BlockSpec((Cr, C), lambda i: (0, 0)),
                    pl.BlockSpec((1, Cr), lambda i: (0, 0)),
                    pl.BlockSpec((C, Cr), lambda i: (0, 0)),
                    pl.BlockSpec((1, C), lambda i: (0, 0)),
                ],
                out_specs=pl.BlockSpec((Nb, C, HWp), lambda i: (i, 0, 0)),
            ),
            compiler_params=pltpu.CompilerParams(
                dimension_semantics=("parallel",),
            ),
            cost_estimate=cost,
            input_output_aliases={0: 0},
        )(x2, w1, b1.reshape(1, Cr), w2, b2.reshape(1, C))
    else:
        # -- two-pass: gates via XLA (negligible), Pallas lane-dense rescale --
        pooled = jnp.mean(x.astype(jnp.float32), axis=(2, 3))          # (N, C)
        h = jnp.maximum(
            pooled @ w1.astype(jnp.float32).T + b1.astype(jnp.float32), 0.0)
        g = jax.nn.sigmoid(
            h @ w2.astype(jnp.float32).T + b2.astype(jnp.float32))     # (N, C)
        g3 = g[:, :, None].astype(jnp.float32)                          # (N, C, 1)

        HWb = _pick_hw_block(HWp, C, itemsize, _BLOCK_BUDGET_BYTES)
        grid = (N, HWp // HWb)

        cost = pl.CostEstimate(
            flops=int(N * C * HWp),
            transcendentals=0,
            bytes_accessed=int(2 * N * C * HWp * itemsize + N * C * 4),
        )

        out2 = pl.pallas_call(
            _rescale_kernel,
            out_shape=jax.ShapeDtypeStruct((N, C, HWp), x.dtype),
            grid_spec=pltpu.PrefetchScalarGridSpec(
                num_scalar_prefetch=0,
                grid=grid,
                in_specs=[
                    pl.BlockSpec((1, C, HWb), lambda n, s: (n, 0, s)),
                    pl.BlockSpec((1, C, 1), lambda n, s: (n, 0, 0)),
                ],
                out_specs=pl.BlockSpec((1, C, HWb), lambda n, s: (n, 0, s)),
            ),
            compiler_params=pltpu.CompilerParams(
                dimension_semantics=("parallel", "parallel"),
            ),
            cost_estimate=cost,
            input_output_aliases={0: 0},
        )(x2, g3)

    if HWp != HW:
        out2 = out2[:, :, :HW]
    return out2.reshape(N, C, H, W)


cse_layer = jax.jit(_cse_layer_impl)


def cse_reference(x, w1, b1, w2, b2):
    """Plain-JAX reference mirroring the PyTorch cSELayer forward."""
    pooled = jnp.mean(x.astype(jnp.float32), axis=(2, 3))              # (N, C)
    h = jnp.maximum(pooled @ w1.T + b1, 0.0)                           # (N, Cr)
    g = jax.nn.sigmoid(h @ w2.T + b2)                                  # (N, C)
    return (x * g[:, :, None, None]).astype(x.dtype)


if __name__ == "__main__":
    key = jax.random.PRNGKey(0)
    configs = [
        # (N, C, H, W, reduction)
        (2, 32, 16, 16, 16),   # small batch  -> two-pass (XLA gates + rescale)
        (8, 32, 16, 16, 16),   # batched      -> fused single-pass kernel
        (8, 32, 8, 8, 8),      # HW=64 narrow -> lane padding to 128, fused
        (2, 32, 8, 8, 8),      # narrow + small batch -> padded two-pass
    ]
    for (N, C, H, W, red) in configs:
        Cr = max(C // red, 1)
        key, kx, k1, k2, k3, k4 = jax.random.split(key, 6)

        x = jax.random.normal(kx, (N, C, H, W), dtype=jnp.float32)
        # 1x1-conv weights squeezed to 2-D matrices (PyTorch layout (out, in)).
        w1 = jax.random.normal(k1, (Cr, C), dtype=jnp.float32) * 0.1
        b1 = jax.random.normal(k2, (Cr,), dtype=jnp.float32) * 0.1
        w2 = jax.random.normal(k3, (C, Cr), dtype=jnp.float32) * 0.1
        b2 = jax.random.normal(k4, (C,), dtype=jnp.float32) * 0.1

        out = jax.block_until_ready(cse_layer(x, w1, b1, w2, b2))
        ref = cse_reference(x, w1, b1, w2, b2)

        assert out.shape == x.shape, (out.shape, x.shape)
        assert jnp.allclose(out, ref, atol=1e-5, rtol=1e-5), \
            f"mismatch vs reference for config {(N, C, H, W, red)}"

    print("KERNEL_OK")
</pallas_src>

<mosaic_0001>
module attributes {stable_mosaic.version = 11 : i64} {
  func.func @_rescale_kernel(%arg0: i32, %arg1: i32, %arg2: memref<1x32x256xf32, #tpu.memory_space<vmem>>, %arg3: memref<1x32x1xf32, #tpu.memory_space<vmem>>, %arg4: memref<1x32x256xf32, #tpu.memory_space<vmem>>) attributes {dimension_semantics = [#tpu.dimension_semantics<parallel>, #tpu.dimension_semantics<parallel>], iteration_bounds = array<i64: 2, 1>, scalar_prefetch = 0 : i64, scratch_operands = 0 : i64, tpu.core_type = #tpu.core_type<tc>, window_params = [{transform_indices = @transform_0, window_bounds = array<i64: 1, 32, 256>}, {transform_indices = @transform_1, window_bounds = array<i64: 1, 32, 1>}, {transform_indices = @transform_2, window_bounds = array<i64: 1, 32, 256>}]} {
    %c0 = arith.constant 0 : index
    %c0_0 = arith.constant 0 : index
    %c0_1 = arith.constant 0 : index
    %0 = vector.load %arg2[%c0, %c0_0, %c0_1] : memref<1x32x256xf32, #tpu.memory_space<vmem>>, vector<1x32x256xf32>
    %c0_2 = arith.constant 0 : index
    %c0_3 = arith.constant 0 : index
    %c0_4 = arith.constant 0 : index
    %1 = vector.load %arg3[%c0_2, %c0_3, %c0_4] : memref<1x32x1xf32, #tpu.memory_space<vmem>>, vector<1x32x1xf32>
    %2 = vector.broadcast %1 : vector<1x32x1xf32> to vector<1x32x256xf32>
    %3 = arith.mulf %0, %2 : vector<1x32x256xf32>
    %c0_5 = arith.constant 0 : index
    %c0_6 = arith.constant 0 : index
    %c0_7 = arith.constant 0 : index
    %4 = vector.load %arg4[%c0_5, %c0_6, %c0_7] : memref<1x32x256xf32, #tpu.memory_space<vmem>>, vector<1x32x256xf32>
    tpu.vector_store %arg4[%c0_5, %c0_6, %c0_7], %3 {strides = array<i32>} : memref<1x32x256xf32, #tpu.memory_space<vmem>>, vector<1x32x256xf32>,
    return
  }
  func.func @transform_0(%arg0: i32, %arg1: i32) -> (i32, i32, i32) {
    %c0_i32 = arith.constant 0 : i32
    %c0_i32_0 = arith.constant 0 : i32
    return %arg0, %c0_i32, %arg1 : i32, i32, i32
  }
  func.func @transform_1(%arg0: i32, %arg1: i32) -> (i32, i32, i32) {
    %c0_i32 = arith.constant 0 : i32
    %c0_i32_0 = arith.constant 0 : i32
    %c0_i32_1 = arith.constant 0 : i32
    return %arg0, %c0_i32, %c0_i32_0 : i32, i32, i32
  }
  func.func @transform_2(%arg0: i32, %arg1: i32) -> (i32, i32, i32) {
    %c0_i32 = arith.constant 0 : i32
    %c0_i32_0 = arith.constant 0 : i32
    return %arg0, %c0_i32, %arg1 : i32, i32, i32
  }
}

</mosaic_0001>

<llo_original>
// kernel: _cse_layer_impl.1
$region0: #{_cse_layer_impl.1}
  #allocation0 [shape = 'u32[]', space=smem, size = 0x4, offset = 0x4, fixed_abs, tag = 'smem constant byte address 0x4 - core index']
  #allocation1 [shape = 'u32[72,128]{1,0:T(1,128)}', space=vmem, size = 0x9000, scoped, tag = 'internal scratch']
  %s0 = inlined_call_operand.vmem [shape: f32[2,32,256], index: 0, kind: input, shape index: {}, may-alias: {0,2}]
  %s1 = inlined_call_operand.vmem [shape: f32[2,32,1], index: 1, kind: input, shape index: {}]
  %s2 = inlined_call_operand.vmem [shape: f32[2,32,256], index: 2, kind: output, shape index: {}, may-alias: {0,2}]
  %s3 = sld [smem:[#allocation0]]
  $region41: #{_cse_layer_impl.1} parent=0
    _
  %s5 = ssub.s32 1, %s3
  %s6 = scalar_select 0, %s5, %s3
  loop: start=0, step=1, limit=4
  $region2: #{_cse_layer_impl.1} parent=0 // loop_pre_header
    _
  $region3: #{_cse_layer_impl.1} parent=0 // loop_header
    %s8 = sphi 0, %s12
    %p9 = scmp.ge.s32.totalorder %s8, 4
    %s15 = sphi 0, %s27
    %s16 = sphi 0, %s23
    %s17 = sphi 0, %s15
    %s18 = sphi 0, %s16
    %s19 = sphi 0, %s17
    %s20 = sphi 0, %s18
    %s32 = sphi 0, %s34
    %s35 = sphi 0, %s32
    %s36 = sphi 0, %s35
    %s52 = sphi 0, %s36
    %s58 = sphi 0, %s60
    %s61 = sphi 0, %s58
    %s62 = sphi 0, %s61
    %s78 = sphi 0, %s62
    %s86 = sphi 0, %s88
    %s89 = sphi 0, %s86
    %s90 = sphi 0, %s89
    %s106 = sphi 0, %s90
  $region4: #{_cse_layer_impl.1} parent=0 // loop_header_branch
    %11 = sbr.rel (%p9) target = $region8
  $region5: #{_cse_layer_impl.1} parent=0 // loop_body
    %s13 = ssub.s32 %s8, 1
    %s14 = ssub.s32 %s8, 2
    %s21 = sadd.s32 1, %s16
    %p22 = scmp.ge.s32.totalorder %s21, 1
    %s23 = scalar_select %p22, 0, %s21
    %s24 = sadd.s32 1, %s15
    %s25 = scalar_select %p22, %s24, %s15
    %p26 = scmp.ge.s32.totalorder %s25, 2
    %s27 = scalar_select %p26, 0, %s25
    %s28 = ssub.s32 %s15, %s27
    %s29 = ssub.s32 %s16, %s23
    %s30 = sor.u32 %s28, %s29
    %p31 = scmp.eq.s32.totalorder %s30, 0
    %s33 = sadd.s32 %s32, 1
    %s34 = scalar_select %p31, %s32, %s33
    %p37 = pneg %p31
    %p38 = scmp.eq.s32.totalorder %s8, 1
    %p39 = por %p37, %p38
    %p40 = scmp.ne.s32.totalorder %s32, %s35
    %p41 = scmp.eq.s32.totalorder %s8, 0
    %p42 = por %p40, %p41
    %p43 = scmp.ne.s32.totalorder %s32, %s35
    %p44 = scmp.eq.s32.totalorder %s13, 1
    %p45 = por %p43, %p44
    %p46 = scmp.ne.s32.totalorder %s35, %s36
    %p47 = scmp.eq.s32.totalorder %s13, 0
    %p48 = por %p46, %p47
    %p49 = scmp.ne.s32.totalorder %s35, %s36
    %p50 = scmp.eq.s32.totalorder %s14, 1
    %p51 = por %p49, %p50
    %p53 = scmp.ne.s32.totalorder %s36, %s52
    %p54 = scmp.eq.s32.totalorder %s14, 0
    %p55 = por %p53, %p54
    %s56 = ssub.s32 %s15, %s27
    %p57 = scmp.eq.s32.totalorder %s56, 0
    %s59 = sadd.s32 %s58, 1
    %s60 = scalar_select %p57, %s58, %s59
    %p63 = pneg %p57
    %p64 = scmp.eq.s32.totalorder %s8, 1
    %p65 = por %p63, %p64
    %p66 = scmp.ne.s32.totalorder %s58, %s61
    %p67 = scmp.eq.s32.totalorder %s8, 0
    %p68 = por %p66, %p67
    %p69 = scmp.ne.s32.totalorder %s58, %s61
    %p70 = scmp.eq.s32.totalorder %s13, 1
    %p71 = por %p69, %p70
    %p72 = scmp.ne.s32.totalorder %s61, %s62
    %p73 = scmp.eq.s32.totalorder %s13, 0
    %p74 = por %p72, %p73
    %p75 = scmp.ne.s32.totalorder %s61, %s62
    %p76 = scmp.eq.s32.totalorder %s14, 1
    %p77 = por %p75, %p76
    %p79 = scmp.ne.s32.totalorder %s62, %s78
    %p80 = scmp.eq.s32.totalorder %s14, 0
    %p81 = por %p79, %p80
    %s82 = ssub.s32 %s15, %s27
    %s83 = ssub.s32 %s16, %s23
    %s84 = sor.u32 %s82, %s83
    %p85 = scmp.eq.s32.totalorder %s84, 0
    %s87 = sadd.s32 %s86, 1
    %s88 = scalar_select %p85, %s86, %s87
    %p91 = pneg %p85
    %p92 = scmp.eq.s32.totalorder %s8, 1
    %p93 = por %p91, %p92
    %p94 = scmp.ne.s32.totalorder %s86, %s89
    %p95 = scmp.eq.s32.totalorder %s8, 0
    %p96 = por %p94, %p95
    %p97 = scmp.ne.s32.totalorder %s86, %s89
    %p98 = scmp.eq.s32.totalorder %s13, 1
    %p99 = por %p97, %p98
    %p100 = scmp.ne.s32.totalorder %s89, %s90
    %p101 = scmp.eq.s32.totalorder %s13, 0
    %p102 = por %p100, %p101
    %p103 = scmp.ne.s32.totalorder %s89, %s90
    %p104 = scmp.eq.s32.totalorder %s14, 1
    %p105 = por %p103, %p104
    %p107 = scmp.ne.s32.totalorder %s90, %s106
    %p108 = scmp.eq.s32.totalorder %s14, 0
    %p109 = por %p107, %p108
    %p110 = scmp.le.s32.totalorder 1, %s8
    %p111 = scmp.lt.s32.totalorder %s8, 3
    %p112 = pnand %p110, %p111
    %p113 = pneg %p112
    // Predicated region
    $region9: #{_cse_layer_impl.1} parent=5 // pred_check
      _
    $region10: #{_cse_layer_impl.1} parent=5 // pred_check_branch
      %115 = sbr.rel (%p112) target = $region12
    $region11: #{_cse_layer_impl.1} parent=5 // pred_region
      %s116 = ssub.s32 %s8, 1
    $region12: #{_cse_layer_impl.1} parent=5 // pred_fallthru
      _
    %p117 = scmp.lt.s32.totalorder %s8, 2
    // Predicated region
    $region13: #{_cse_layer_impl.1} parent=5 // pred_check
      %p118 = pneg %p117
    $region14: #{_cse_layer_impl.1} parent=5 // pred_check_branch
      %120 = sbr.rel (%p118) target = $region16
    $region15: #{_cse_layer_impl.1} parent=5 // pred_region
      // Predicated region
      $region17: #{_cse_layer_impl.1} parent=15 // pred_check
        %p121 = pneg %p42
      $region18: #{_cse_layer_impl.1} parent=15 // pred_check_branch
        %123 = sbr.rel (%p121) target = $region20
      $region19: #{_cse_layer_impl.1} parent=15 // pred_region
        %s124 = smul.u32 2, %s16
        %p125 = scmp.lt.s32.totalorder %s15, 1
        %s126 = scalar_select %p125, %s15, 1
        %p127 = scmp.lt.s32.totalorder %s124, 1
        %s128 = scalar_select %p127, %s124, 1
        %s129 = smul.addr %s126, 8
        %s130 = sadd.s32 %s128, %s129
        %s131 = smul.addr %s130, 8
        %s132 = scalar_lea.vmem %s0, %s131
        %s133 = smul.u32 2, %s16
      $region20: #{_cse_layer_impl.1} parent=15 // pred_fallthru
        _
      // Predicated region
      $region21: #{_cse_layer_impl.1} parent=15 // pred_check
        %p134 = pneg %p68
      $region22: #{_cse_layer_impl.1} parent=15 // pred_check_branch
        %136 = sbr.rel (%p134) target = $region24
      $region23: #{_cse_layer_impl.1} parent=15 // pred_region
        %p137 = scmp.lt.s32.totalorder %s15, 1
        %s138 = scalar_select %p137, %s15, 1
        %s139 = smul.addr %s138, 4
        %s140 = smul.addr %s139, 8
        %s141 = scalar_lea.vmem %s1, %s140
      $region24: #{_cse_layer_impl.1} parent=15 // pred_fallthru
        _
    $region16: #{_cse_layer_impl.1} parent=5 // pred_fallthru
      _
    %p142 = scmp.le.s32.totalorder 1, %s8
    %p143 = scmp.lt.s32.totalorder %s8, 3
    %p144 = pnand %p142, %p143
    %p145 = pneg %p144
    // Predicated region
    $region25: #{_cse_layer_impl.1} parent=5 // pred_check
      _
    $region26: #{_cse_layer_impl.1} parent=5 // pred_check_branch
      %147 = sbr.rel (%p144) target = $region28
    $region27: #{_cse_layer_impl.1} parent=5 // pred_region
      %s148 = ssub.s32 %s8, 1
      %s149 = smul.u32 2, %s18
      %p150 = scmp.lt.s32.totalorder %s17, 1
      %s151 = scalar_select %p150, %s17, 1
      %p152 = scmp.lt.s32.totalorder %s149, 1
      %s153 = scalar_select %p152, %s149, 1
      %s154 = smul.addr %s151, 8
      %s155 = sadd.s32 %s153, %s154
      %s156 = smul.addr %s155, 8
      %s157 = scalar_lea.vmem %s0, %s156
      %p158 = pneg %p48
      %p159 = pneg %p45
      %p160 = scmp.lt.s32.totalorder %s17, 1
      %s161 = scalar_select %p160, %s17, 1
      %s162 = smul.addr %s161, 4
      %s163 = smul.addr %s162, 8
      %s164 = scalar_lea.vmem %s1, %s163
      %p165 = pneg %p74
      %p166 = pneg %p71
      %p167 = pneg %p102
      %p168 = pneg %p99
      %s169 = smul.u32 2, %s18
      %p170 = scmp.lt.s32.totalorder %s17, 1
      %s171 = scalar_select %p170, %s17, 1
      %p172 = scmp.lt.s32.totalorder %s169, 1
      %s173 = scalar_select %p172, %s169, 1
      %s174 = smul.addr %s171, 8
      %s175 = sadd.s32 %s173, %s174
      %s176 = smul.addr %s175, 8
      %s177 = scalar_lea.vmem %s2, %s176
      %s178 = smul.u32 2, %s18
      %p179 = scmp.lt.s32.totalorder %s17, 1
      %s180 = scalar_select %p179, %s17, 1
      %p181 = scmp.lt.s32.totalorder %s178, 1
      %s182 = scalar_select %p181, %s178, 1
      %s183 = smul.addr %s180, 8
      %s184 = sadd.s32 %s182, %s183
      %s185 = smul.addr %s184, 8
      %s186 = scalar_lea.vmem %s0, %s185
      %s187 = smul.u32 2, %s18
      %p188 = scmp.lt.s32.totalorder %s17, 1
      %s189 = scalar_select %p188, %s17, 1
      %s190 = smul.addr %s189, 4
      %s191 = smul.addr %s190, 8
      %s192 = scalar_lea.vmem %s1, %s191
      %s193 = smul.u32 2, %s18
      %p194 = scmp.lt.s32.totalorder %s17, 1
      %s195 = scalar_select %p194, %s17, 1
      %p196 = scmp.lt.s32.totalorder %s193, 1
      %s197 = scalar_select %p196, %s193, 1
      %s198 = smul.addr %s195, 8
      %s199 = sadd.s32 %s197, %s198
      %s200 = smul.addr %s199, 8
      %s201 = scalar_lea.vmem %s2, %s200
      %s202 = smul.u32 2, %s18
      %v203 = vld [vmem:[%s186] sm:$0xff]
      %v204 = vld [vmem:[%s186 + $0x8] sm:$0xff]
      %v205 = vld [vmem:[%s186 + $0x10] sm:$0xff]
      %v206 = vld [vmem:[%s186 + $0x18] sm:$0xff]
      %v207 = vld [vmem:[%s186 + $0x20] sm:$0xff]
      %v208 = vld [vmem:[%s186 + $0x28] sm:$0xff]
      %v209 = vld [vmem:[%s186 + $0x30] sm:$0xff]
      %v210 = vld [vmem:[%s186 + $0x38] sm:$0xff]
      %v211 = vld [vmem:[%s192] sm:$0xff]
      %v212 = vld [vmem:[%s192 + $0x8] sm:$0xff]
      %v213 = vld [vmem:[%s192 + $0x10] sm:$0xff]
      %v214 = vld [vmem:[%s192 + $0x18] sm:$0xff]
      %216 = vset.pattern.permute.xlu0 0
      %217 = vperm.xlu0 %216, %v211
      %v218 = vpop.permute.xlu0 %217
      %221 = vset.pattern.permute.xlu0 0
      %222 = vperm.xlu0 %221, %v212
      %v223 = vpop.permute.xlu0 %222
      %226 = vset.pattern.permute.xlu0 0
      %227 = vperm.xlu0 %226, %v213
      %v228 = vpop.permute.xlu0 %227
      %231 = vset.pattern.permute.xlu0 0
      %232 = vperm.xlu0 %231, %v214
      %v233 = vpop.permute.xlu0 %232
      %v235 = vmul.f32 %v203, %v218
      %v236 = vmul.f32 %v204, %v218
      %v237 = vmul.f32 %v205, %v223
      %v238 = vmul.f32 %v206, %v223
      %v239 = vmul.f32 %v207, %v228
      %v240 = vmul.f32 %v208, %v228
      %v241 = vmul.f32 %v209, %v233
      %v242 = vmul.f32 %v210, %v233
      %243 = vst [vmem:[%s201] sm:$0xff] %v235
      %244 = vst [vmem:[%s201 + $0x8] sm:$0xff] %v236
      %245 = vst [vmem:[%s201 + $0x10] sm:$0xff] %v237
      %246 = vst [vmem:[%s201 + $0x18] sm:$0xff] %v238
      %247 = vst [vmem:[%s201 + $0x20] sm:$0xff] %v239
      %248 = vst [vmem:[%s201 + $0x28] sm:$0xff] %v240
      %249 = vst [vmem:[%s201 + $0x30] sm:$0xff] %v241
      %250 = vst [vmem:[%s201 + $0x38] sm:$0xff] %v242
      %s251 = smul.u32 2, %s18
      %p252 = scmp.lt.s32.totalorder %s17, 1
      %s253 = scalar_select %p252, %s17, 1
      %p254 = scmp.lt.s32.totalorder %s251, 1
      %s255 = scalar_select %p254, %s251, 1
      %s256 = smul.addr %s253, 8
      %s257 = sadd.s32 %s255, %s256
      %s258 = smul.addr %s257, 8
      %s259 = scalar_lea.vmem %s2, %s258
      // Predicated region
      $region29: #{_cse_layer_impl.1} parent=27 // pred_check
        %p260 = pneg %p99
      $region30: #{_cse_layer_impl.1} parent=27 // pred_check_branch
        %262 = sbr.rel (%p260) target = $region32
      $region31: #{_cse_layer_impl.1} parent=27 // pred_region
        %s263 = smul.u32 2, %s18
      $region32: #{_cse_layer_impl.1} parent=27 // pred_fallthru
        _
    $region28: #{_cse_layer_impl.1} parent=5 // pred_fallthru
      _
    %p264 = scmp.le.s32.totalorder 2, %s8
    // Predicated region
    $region33: #{_cse_layer_impl.1} parent=5 // pred_check
      %p265 = pneg %p264
    $region34: #{_cse_layer_impl.1} parent=5 // pred_check_branch
      %267 = sbr.rel (%p265) target = $region36
    $region35: #{_cse_layer_impl.1} parent=5 // pred_region
      %s268 = ssub.s32 %s8, 2
      // Predicated region
      $region37: #{_cse_layer_impl.1} parent=35 // pred_check
        %p269 = pneg %p105
      $region38: #{_cse_layer_impl.1} parent=35 // pred_check_branch
        %271 = sbr.rel (%p269) target = $region40
      $region39: #{_cse_layer_impl.1} parent=35 // pred_region
        %s272 = smul.u32 2, %s20
        %p273 = scmp.lt.s32.totalorder %s19, 1
        %s274 = scalar_select %p273, %s19, 1
        %p275 = scmp.lt.s32.totalorder %s272, 1
        %s276 = scalar_select %p275, %s272, 1
        %s277 = smul.addr %s274, 8
        %s278 = sadd.s32 %s276, %s277
        %s279 = smul.addr %s278, 8
        %s280 = scalar_lea.vmem %s2, %s279
      $region40: #{_cse_layer_impl.1} parent=35 // pred_fallthru
        _
    $region36: #{_cse_layer_impl.1} parent=5 // pred_fallthru
      _
  $region6: #{_cse_layer_impl.1} parent=0 // loop_footer
    %s12 = sadd.s32 1, %s8
  $region7: #{_cse_layer_impl.1} parent=0 // loop_footer_branch
    %7 = sbr.rel target = $region3
  $region8: #{_cse_layer_impl.1} parent=0 // loop_exit
    _

</llo_original>
